<compile_context>
chip_gen: v5e
topology: v5e:2x2
jax: 0.10.0
libtpu: 0.0.40
codegen_flags: <defaults>
</compile_context>

<pallas_src>
import functools

import jax
import jax.numpy as jnp
from jax.experimental import pallas as pl
from jax.experimental.pallas import tpu as pltpu

# ---- static "args" / model configuration (synthetic, deterministic) ----
APP_WT = 0.1
STRUCT_WT = 1.0
ID_WT = 1.0
PATCH = 4                      # ViT patch size
EMBED = 32                     # ViT embedding dim
N_GROUPS = 4                   # tgt, src, tgt_predict, src_predict
VMEM_LIMIT = 32 * 1024 * 1024  # safe scoped-VMEM ceiling on v5e/v6e/v7x


def _round_up(x, m):
    return (x + m - 1) // m * m


def _pick_sample_block(batch, max_blk=8):
    """Samples per grid step: grow MXU M (v6e) but keep >=2 steps for v7x's 2 TCs."""
    s = min(max_blk, max(1, batch // 2))
    while batch % s:
        s -= 1
    return s


# ------------------------- fused Pallas kernel -------------------------
def _fused_trainer_kernel(tp_ref, sp_ref, wg_ref, bg_ref, wp_ref, pos_ref,
                          wf_ref, wk_ref, out_ref):
    """Generator + synthetic-ViT + the three MSE partial sums for S samples.

    tp_ref/sp_ref : [S, NP, pd] f32 raw patch tokens of tgt / src (no CLS/pad).
    wg_ref/bg_ref : [pd, pd] / [1, pd] f32 generator folded to token space
                    (kron(w, I_{P*P}), repeat(b, P*P)).
    wp_ref        : [pd, d] bf16 patch embedding (vit_transform affine folded in).
    pos_ref       : [ntp, d] f32 positional embedding; pad rows are zero so
                    padded tokens yield exactly-zero keys and drop out of losses.
    wf_ref/wk_ref : [d, d] bf16.
    out_ref       : [1, 8, 128] f32; rows 0/1/2 = app/struct/id squared-error
                    sums over the S samples of this step (lane-dense store).
    """
    S, NP, pd = tp_ref.shape
    ntp, d = pos_ref.shape
    pad = ntp - NP - 1

    # ---- generator on both images: pointwise conv as one MXU matmul ----
    x_t = tp_ref[...].reshape(S * NP, pd)
    x_s = sp_ref[...].reshape(S * NP, pd)
    xs = jnp.concatenate([x_t, x_s], axis=0)                       # [2*S*NP, pd]
    gen = jnp.tanh(jnp.dot(xs, wg_ref[...],
                           preferred_element_type=jnp.float32) + bg_ref[...])
    # group-major rows: 0=tgt, 1=src, 2=tgt_predict, 3=src_predict
    patches = jnp.concatenate([xs, gen], axis=0)                    # [4*S*NP, pd]

    # ---- ViT patch embedding (single large-M bf16 MXU pass, f32 accumulate) ----
    h_raw = jnp.dot(patches.astype(jnp.bfloat16), wp_ref[...],
                    preferred_element_type=jnp.float32)             # [4*S*NP, d]
    h3 = h_raw.reshape(N_GROUPS * S, NP, d)
    # CLS = mean-pooled patch token; mean(patches) @ wp == mean(patches @ wp)
    cls3 = jnp.mean(h3, axis=1, keepdims=True)                      # [4S, 1, d]
    pieces = [cls3, h3]
    if pad:
        pieces.append(jnp.zeros((N_GROUPS * S, pad, d), jnp.float32))
    h_tok = jnp.concatenate(pieces, axis=1) + pos_ref[...][None]    # [4S, ntp, d]

    # ---- "layer-11" features and keys, batched over all groups & samples ----
    h_flat = h_tok.reshape(N_GROUPS * S * ntp, d)
    feat = jnp.tanh(jnp.dot(h_flat.astype(jnp.bfloat16), wf_ref[...],
                            preferred_element_type=jnp.float32))
    keys = jnp.dot(feat.astype(jnp.bfloat16), wk_ref[...],
                   preferred_element_type=jnp.float32)
    feat3 = feat.reshape(N_GROUPS * S, ntp, d)
    keys3 = keys.reshape(N_GROUPS * S, ntp, d)

    # app: CLS(tgt) vs CLS(src_predict)            (groups 0 and 3)
    app_sum = jnp.sum(jnp.square(feat3[0:S, 0:1, :] - feat3[3 * S:4 * S, 0:1, :]))
    # id: keys(tgt) vs keys(tgt_predict)           (groups 0 and 2)
    id_sum = jnp.sum(jnp.square(keys3[0:S] - keys3[2 * S:3 * S]))

    # struct: per-sample key cosine self-sim of src vs src_predict (groups 1, 3)
    def self_sim(k):                                                # k: [S, ntp, d]
        inv = jax.lax.rsqrt(jnp.sum(k * k, axis=-1, keepdims=True) + 1e-8)
        kn = k * inv
        return jax.lax.dot_general(kn, kn, (((2,), (2,)), ((0,), (0,))),
                                   preferred_element_type=jnp.float32)
    struct_sum = jnp.sum(jnp.square(self_sim(keys3[S:2 * S]) -
                                    self_sim(keys3[3 * S:4 * S])))

    # one unmasked lane-dense (8,128) store: rows 0/1/2 = app/struct/id sums
    row = jax.lax.broadcasted_iota(jnp.int32, (8, 128), 0)
    out_ref[0] = jnp.where(row == 0, app_sum,
                 jnp.where(row == 1, struct_sum,
                 jnp.where(row == 2, id_sum, 0.0))).astype(jnp.float32)


# ------------------------- wrappers -------------------------
def _patchify(x_nchw, patch):
    """NCHW -> [B, n_patches, C*P*P]; column order (c, py, px). Layout only."""
    B, C, H, W = x_nchw.shape
    x = x_nchw.reshape(B, C, H // patch, patch, W // patch, patch)
    x = jnp.transpose(x, (0, 2, 4, 1, 3, 5))
    return x.reshape(B, (H // patch) * (W // patch), C * patch * patch)


def fused_loss_sums(tgt_p, src_p, wg_big, bg_big, ext, s_blk):
    """Per-grid-step app/struct/id squared-error sums: [nsteps, 8, 128]."""
    B, NP, pd = tgt_p.shape
    ntp, d = ext["pos_eff"].shape
    nsteps = B // s_blk
    # Constant-index weight blocks are revisited with the same block index every
    # step, so Pallas does not re-DMA them across grid iterations.
    return pl.pallas_call(
        _fused_trainer_kernel,
        out_shape=jax.ShapeDtypeStruct((nsteps, 8, 128), jnp.float32),
        grid=(nsteps,),
        in_specs=[
            pl.BlockSpec((s_blk, NP, pd), lambda g: (g, 0, 0)),   # tgt patches
            pl.BlockSpec((s_blk, NP, pd), lambda g: (g, 0, 0)),   # src patches
            pl.BlockSpec((pd, pd), lambda g: (0, 0)),             # generator kron W
            pl.BlockSpec((1, pd), lambda g: (0, 0)),              # generator bias
            pl.BlockSpec((pd, d), lambda g: (0, 0)),              # wp_eff
            pl.BlockSpec((ntp, d), lambda g: (0, 0)),             # pos_eff
            pl.BlockSpec((d, d), lambda g: (0, 0)),               # wf
            pl.BlockSpec((d, d), lambda g: (0, 0)),               # wk
        ],
        out_specs=pl.BlockSpec((1, 8, 128), lambda g: (g, 0, 0)),
        compiler_params=pltpu.CompilerParams(
            dimension_semantics=("parallel",),
            vmem_limit_bytes=VMEM_LIMIT),
    )(tgt_p, src_p, wg_big, bg_big, ext["wp_eff"], ext["pos_eff"],
      ext["wf"], ext["wk"])


@functools.partial(jax.jit, static_argnames=("layer",))
def trainer_forward(tgt, src, params, layer=11):
    """Mirrors Trainer.forward(tgt, src, layer) and returns the loss_dict."""
    del layer  # synthetic extractor exposes a single feature layer
    gen, ext = params["generator"], params["extractor"]
    B, C, H, W = tgt.shape
    NP = (H // PATCH) * (W // PATCH)
    n_tok = 1 + NP
    d = ext["wf"].shape[0]
    pp = PATCH * PATCH

    # fold the pointwise (1x1-conv) generator into a patch-token matmul:
    #   gen_tok = tanh(x_tok @ kron(w, I_pp) + repeat(b, pp))
    wg_big = jnp.kron(gen["w"], jnp.eye(pp, dtype=jnp.float32))      # [pd, pd]
    bg_big = jnp.repeat(gen["b"], pp)[None, :]                       # [1, pd]

    # tiny layout-only relayout of the ORIGINAL inputs (generator outputs and
    # all intermediate features stay in VMEM inside the fused kernel)
    tgt_p = _patchify(tgt, PATCH)                                    # [B, NP, pd]
    src_p = _patchify(src, PATCH)

    s_blk = _pick_sample_block(B)
    sums = fused_loss_sums(tgt_p, src_p, wg_big, bg_big, ext, s_blk)  # [steps,8,128]

    # final reduction + weighting: a handful of scalars, plain jnp.
    # (padded rows contribute exactly zero, so real element counts are used.)
    app_sum = jnp.sum(sums[:, 0, 0])
    struct_sum = jnp.sum(sums[:, 1, 0])
    id_sum = jnp.sum(sums[:, 2, 0])
    loss_app = app_sum / (B * d) * APP_WT
    loss_struct = struct_sum / (B * n_tok * n_tok) * STRUCT_WT
    loss_id = id_sum / (B * n_tok * d) * ID_WT
    loss = loss_app + loss_struct + loss_id
    # TODO(synk): loss.backward(), optimizer.zero_grad()/step() (in-place Adam
    # update) and save_model are training-side effects with no forward-pass
    # Pallas equivalent; only the returned loss_dict is reproduced.
    return {"app": loss_app, "struct": loss_struct, "id": loss_id, "loss": loss}


def init_params(key, C, H, W):
    pd = C * PATCH * PATCH
    n_tok = 1 + (H // PATCH) * (W // PATCH)
    ntp = _round_up(n_tok, 8)
    d = EMBED
    ks = jax.random.split(key, 6)
    mean = jnp.array([0.485, 0.456, 0.406, 0.5], jnp.float32)[:C]
    std = jnp.array([0.229, 0.224, 0.225, 0.25], jnp.float32)[:C]
    rep = PATCH * PATCH
    norm_scale = jnp.repeat(1.0 / std, rep)                    # [pd]
    norm_shift = jnp.repeat(-mean / std, rep)                  # [pd]

    gen = {"w": 0.3 * jax.random.normal(ks[0], (C, C), jnp.float32)
                 + jnp.eye(C, dtype=jnp.float32),
           "b": 0.05 * jax.random.normal(ks[1], (C,), jnp.float32)}

    wp = 0.05 * jax.random.normal(ks[2], (pd, d), jnp.float32)
    pos = 0.02 * jax.random.normal(ks[3], (n_tok, d), jnp.float32)
    wf = 0.2 * jax.random.normal(ks[4], (d, d), jnp.float32)
    wk = 0.2 * jax.random.normal(ks[5], (d, d), jnp.float32)

    # fold the vit_transform per-channel affine into the patch embedding:
    #   (p*scale + shift) @ wp + pos == p @ (scale[:,None]*wp) + (shift@wp + pos)
    wp_eff = wp * norm_scale[:, None]
    pos_eff = pos + norm_shift[None, :] @ wp
    # pad rows are exactly zero so padded tokens produce zero keys everywhere
    pos_eff = jnp.zeros((ntp, d), jnp.float32).at[:n_tok].set(pos_eff)

    ext = {"wp_eff": wp_eff.astype(jnp.bfloat16),   # bf16 matmul inputs (MXU-native)
           "pos_eff": pos_eff,                      # f32 (added after f32 accumulation)
           "wf": wf.astype(jnp.bfloat16),
           "wk": wk.astype(jnp.bfloat16)}
    return {"generator": gen, "extractor": ext}


if __name__ == "__main__":
    B, C, H, W = 2, 4, 16, 16
    key = jax.random.PRNGKey(0)
    kx, ky, kp = jax.random.split(key, 3)
    tgt = jax.random.normal(kx, (B, C, H, W), jnp.float32)
    src = jax.random.normal(ky, (B, C, H, W), jnp.float32)
    params = init_params(kp, C, H, W)

    loss_dict = trainer_forward(tgt, src, params, layer=11)
    jax.block_until_ready(loss_dict)
    print("KERNEL_OK")
</pallas_src>

<mosaic_0001>
module attributes {stable_mosaic.version = 11 : i64} {
  func.func @_fused_trainer_kernel(%arg0: i32, %arg1: memref<1x16x64xf32, #tpu.memory_space<vmem>>, %arg2: memref<1x16x64xf32, #tpu.memory_space<vmem>>, %arg3: memref<64x64xf32, #tpu.memory_space<vmem>>, %arg4: memref<1x64xf32, #tpu.memory_space<vmem>>, %arg5: memref<64x32xbf16, #tpu.memory_space<vmem>>, %arg6: memref<24x32xf32, #tpu.memory_space<vmem>>, %arg7: memref<32x32xbf16, #tpu.memory_space<vmem>>, %arg8: memref<32x32xbf16, #tpu.memory_space<vmem>>, %arg9: memref<1x8x128xf32, #tpu.memory_space<vmem>>) attributes {dimension_semantics = [#tpu.dimension_semantics<parallel>], iteration_bounds = array<i64: 2>, scalar_prefetch = 0 : i64, scratch_operands = 0 : i64, tpu.core_type = #tpu.core_type<tc>, window_params = [{transform_indices = @transform_0, window_bounds = array<i64: 1, 16, 64>}, {transform_indices = @transform_1, window_bounds = array<i64: 1, 16, 64>}, {pipeline_mode = #tpu.pipeline_mode<synchronous>, transform_indices = @transform_2, window_bounds = array<i64: 64, 64>}, {pipeline_mode = #tpu.pipeline_mode<synchronous>, transform_indices = @transform_3, window_bounds = array<i64: 1, 64>}, {pipeline_mode = #tpu.pipeline_mode<synchronous>, transform_indices = @transform_4, window_bounds = array<i64: 64, 32>}, {pipeline_mode = #tpu.pipeline_mode<synchronous>, transform_indices = @transform_5, window_bounds = array<i64: 24, 32>}, {pipeline_mode = #tpu.pipeline_mode<synchronous>, transform_indices = @transform_6, window_bounds = array<i64: 32, 32>}, {pipeline_mode = #tpu.pipeline_mode<synchronous>, transform_indices = @transform_7, window_bounds = array<i64: 32, 32>}, {transform_indices = @transform_8, window_bounds = array<i64: 1, 8, 128>}]} {
    %c0 = arith.constant 0 : index
    %c0_0 = arith.constant 0 : index
    %c0_1 = arith.constant 0 : index
    %0 = vector.load %arg1[%c0, %c0_0, %c0_1] : memref<1x16x64xf32, #tpu.memory_space<vmem>>, vector<1x16x64xf32>
    %1 = vector.shape_cast %0 : vector<1x16x64xf32> to vector<16x64xf32>
    %c0_2 = arith.constant 0 : index
    %c0_3 = arith.constant 0 : index
    %c0_4 = arith.constant 0 : index
    %2 = vector.load %arg2[%c0_2, %c0_3, %c0_4] : memref<1x16x64xf32, #tpu.memory_space<vmem>>, vector<1x16x64xf32>
    %3 = vector.shape_cast %2 : vector<1x16x64xf32> to vector<16x64xf32>
    %4 = tpu.concatenate %1, %3 in 0 : vector<16x64xf32>, vector<16x64xf32> -> vector<32x64xf32>
    %c0_5 = arith.constant 0 : index
    %c0_6 = arith.constant 0 : index
    %5 = vector.load %arg3[%c0_5, %c0_6] : memref<64x64xf32, #tpu.memory_space<vmem>>, vector<64x64xf32>
    %cst = arith.constant dense<0.000000e+00> : vector<32x64xf32>
    %6 = tpu.matmul %4, %5, %cst {dimension_numbers = #tpu.dot_dimension_numbers<[1], [0], [0], [1], [0, 0, 1, 1], [], []>} : vector<32x64xf32>, vector<64x64xf32>, vector<32x64xf32> -> vector<32x64xf32>
    %c0_7 = arith.constant 0 : index
    %c0_8 = arith.constant 0 : index
    %7 = vector.load %arg4[%c0_7, %c0_8] : memref<1x64xf32, #tpu.memory_space<vmem>>, vector<1x64xf32>
    %8 = vector.broadcast %7 : vector<1x64xf32> to vector<32x64xf32>
    %9 = arith.addf %6, %8 : vector<32x64xf32>
    %10 = math.tanh %9 : vector<32x64xf32>
    %11 = tpu.concatenate %4, %10 in 0 : vector<32x64xf32>, vector<32x64xf32> -> vector<64x64xf32>
    %12 = arith.truncf %11 : vector<64x64xf32> to vector<64x64xbf16>
    %c0_9 = arith.constant 0 : index
    %c0_10 = arith.constant 0 : index
    %13 = vector.load %arg5[%c0_9, %c0_10] : memref<64x32xbf16, #tpu.memory_space<vmem>>, vector<64x32xbf16>
    %cst_11 = arith.constant dense<0.000000e+00> : vector<64x32xf32>
    %14 = tpu.matmul %12, %13, %cst_11 {dimension_numbers = #tpu.dot_dimension_numbers<[1], [0], [0], [1], [0, 0, 1, 1], [], []>} : vector<64x64xbf16>, vector<64x32xbf16>, vector<64x32xf32> -> vector<64x32xf32>
    %15 = vector.shape_cast %14 : vector<64x32xf32> to vector<4x16x32xf32>
    %cst_12 = arith.constant dense<0.000000e+00> : vector<4x32xf32>
    %16 = vector.multi_reduction <add>, %15, %cst_12 [1] : vector<4x16x32xf32> to vector<4x32xf32>
    %17 = vector.shape_cast %16 : vector<4x32xf32> to vector<4x1x32xf32>
    %cst_13 = arith.constant 1.600000e+01 : f32
    %18 = vector.broadcast %cst_13 : f32 to vector<4x1x32xf32>
    %19 = arith.divf %17, %18 : vector<4x1x32xf32>
    %cst_14 = arith.constant 0.000000e+00 : f32
    %20 = vector.broadcast %cst_14 : f32 to vector<4x7x32xf32>
    %21 = tpu.concatenate %19, %15, %20 in 1 : vector<4x1x32xf32>, vector<4x16x32xf32>, vector<4x7x32xf32> -> vector<4x24x32xf32>
    %c0_15 = arith.constant 0 : index
    %c0_16 = arith.constant 0 : index
    %22 = vector.load %arg6[%c0_15, %c0_16] : memref<24x32xf32, #tpu.memory_space<vmem>>, vector<24x32xf32>
    %23 = vector.shape_cast %22 : vector<24x32xf32> to vector<1x24x32xf32>
    %24 = vector.broadcast %23 : vector<1x24x32xf32> to vector<4x24x32xf32>
    %25 = arith.addf %21, %24 : vector<4x24x32xf32>
    %26 = vector.shape_cast %25 : vector<4x24x32xf32> to vector<96x32xf32>
    %27 = arith.truncf %26 : vector<96x32xf32> to vector<96x32xbf16>
    %c0_17 = arith.constant 0 : index
    %c0_18 = arith.constant 0 : index
    %28 = vector.load %arg7[%c0_17, %c0_18] : memref<32x32xbf16, #tpu.memory_space<vmem>>, vector<32x32xbf16>
    %cst_19 = arith.constant dense<0.000000e+00> : vector<96x32xf32>
    %29 = tpu.matmul %27, %28, %cst_19 {dimension_numbers = #tpu.dot_dimension_numbers<[1], [0], [0], [1], [0, 0, 1, 1], [], []>} : vector<96x32xbf16>, vector<32x32xbf16>, vector<96x32xf32> -> vector<96x32xf32>
    %30 = math.tanh %29 : vector<96x32xf32>
    %31 = arith.truncf %30 : vector<96x32xf32> to vector<96x32xbf16>
    %c0_20 = arith.constant 0 : index
    %c0_21 = arith.constant 0 : index
    %32 = vector.load %arg8[%c0_20, %c0_21] : memref<32x32xbf16, #tpu.memory_space<vmem>>, vector<32x32xbf16>
    %cst_22 = arith.constant dense<0.000000e+00> : vector<96x32xf32>
    %33 = tpu.matmul %31, %32, %cst_22 {dimension_numbers = #tpu.dot_dimension_numbers<[1], [0], [0], [1], [0, 0, 1, 1], [], []>} : vector<96x32xbf16>, vector<32x32xbf16>, vector<96x32xf32> -> vector<96x32xf32>
    %34 = vector.shape_cast %30 : vector<96x32xf32> to vector<4x24x32xf32>
    %35 = vector.shape_cast %33 : vector<96x32xf32> to vector<4x24x32xf32>
    %36 = vector.extract_strided_slice %34 {offsets = [0, 0, 0], sizes = [1, 1, 32], strides = [1, 1, 1]} : vector<4x24x32xf32> to vector<1x1x32xf32>
    %37 = vector.extract_strided_slice %34 {offsets = [3, 0, 0], sizes = [1, 1, 32], strides = [1, 1, 1]} : vector<4x24x32xf32> to vector<1x1x32xf32>
    %38 = arith.subf %36, %37 : vector<1x1x32xf32>
    %39 = arith.mulf %38, %38 : vector<1x1x32xf32>
    %40 = vector.shape_cast %39 : vector<1x1x32xf32> to vector<1x1x1x32xf32>
    %cst_23 = arith.constant dense<0.000000e+00> : vector<1xf32>
    %41 = vector.multi_reduction <add>, %40, %cst_23 [1, 2, 3] : vector<1x1x1x32xf32> to vector<1xf32>
    %42 = vector.shape_cast %41 : vector<1xf32> to vector<1x1x1x1xf32>
    %43 = vector.extract %42[0, 0, 0, 0] : f32 from vector<1x1x1x1xf32>
    %44 = vector.extract_strided_slice %35 {offsets = [0, 0, 0], sizes = [1, 24, 32], strides = [1, 1, 1]} : vector<4x24x32xf32> to vector<1x24x32xf32>
    %45 = vector.extract_strided_slice %35 {offsets = [2, 0, 0], sizes = [1, 24, 32], strides = [1, 1, 1]} : vector<4x24x32xf32> to vector<1x24x32xf32>
    %46 = arith.subf %44, %45 : vector<1x24x32xf32>
    %47 = arith.mulf %46, %46 : vector<1x24x32xf32>
    %48 = vector.shape_cast %47 : vector<1x24x32xf32> to vector<1x1x24x32xf32>
    %cst_24 = arith.constant dense<0.000000e+00> : vector<1xf32>
    %49 = vector.multi_reduction <add>, %48, %cst_24 [1, 2, 3] : vector<1x1x24x32xf32> to vector<1xf32>
    %50 = vector.shape_cast %49 : vector<1xf32> to vector<1x1x1x1xf32>
    %51 = vector.extract %50[0, 0, 0, 0] : f32 from vector<1x1x1x1xf32>
    %52 = vector.extract_strided_slice %35 {offsets = [1, 0, 0], sizes = [1, 24, 32], strides = [1, 1, 1]} : vector<4x24x32xf32> to vector<1x24x32xf32>
    %53 = arith.mulf %52, %52 : vector<1x24x32xf32>
    %cst_25 = arith.constant dense<0.000000e+00> : vector<1x24xf32>
    %54 = vector.multi_reduction <add>, %53, %cst_25 [2] : vector<1x24x32xf32> to vector<1x24xf32>
    %55 = vector.shape_cast %54 : vector<1x24xf32> to vector<1x24x1xf32>
    %cst_26 = arith.constant 9.99999993E-9 : f32
    %56 = vector.broadcast %cst_26 : f32 to vector<1x24x1xf32>
    %57 = arith.addf %55, %56 : vector<1x24x1xf32>
    %58 = math.rsqrt %57 : vector<1x24x1xf32>
    %59 = vector.broadcast %58 : vector<1x24x1xf32> to vector<1x24x32xf32>
    %60 = arith.mulf %52, %59 : vector<1x24x32xf32>
    %cst_27 = arith.constant dense<0.000000e+00> : vector<1x24x24xf32>
    %61 = tpu.matmul %60, %60, %cst_27 {dimension_numbers = #tpu.dot_dimension_numbers<[2], [2], [1], [1], [0, 0, 0, 1, 1, 1], [0], [0]>} : vector<1x24x32xf32>, vector<1x24x32xf32>, vector<1x24x24xf32> -> vector<1x24x24xf32>
    %62 = vector.extract_strided_slice %35 {offsets = [3, 0, 0], sizes = [1, 24, 32], strides = [1, 1, 1]} : vector<4x24x32xf32> to vector<1x24x32xf32>
    %63 = arith.mulf %62, %62 : vector<1x24x32xf32>
    %cst_28 = arith.constant dense<0.000000e+00> : vector<1x24xf32>
    %64 = vector.multi_reduction <add>, %63, %cst_28 [2] : vector<1x24x32xf32> to vector<1x24xf32>
    %65 = vector.shape_cast %64 : vector<1x24xf32> to vector<1x24x1xf32>
    %cst_29 = arith.constant 9.99999993E-9 : f32
    %66 = vector.broadcast %cst_29 : f32 to vector<1x24x1xf32>
    %67 = arith.addf %65, %66 : vector<1x24x1xf32>
    %68 = math.rsqrt %67 : vector<1x24x1xf32>
    %69 = vector.broadcast %68 : vector<1x24x1xf32> to vector<1x24x32xf32>
    %70 = arith.mulf %62, %69 : vector<1x24x32xf32>
    %cst_30 = arith.constant dense<0.000000e+00> : vector<1x24x24xf32>
    %71 = tpu.matmul %70, %70, %cst_30 {dimension_numbers = #tpu.dot_dimension_numbers<[2], [2], [1], [1], [0, 0, 0, 1, 1, 1], [0], [0]>} : vector<1x24x32xf32>, vector<1x24x32xf32>, vector<1x24x24xf32> -> vector<1x24x24xf32>
    %72 = arith.subf %61, %71 : vector<1x24x24xf32>
    %73 = arith.mulf %72, %72 : vector<1x24x24xf32>
    %74 = vector.shape_cast %73 : vector<1x24x24xf32> to vector<1x1x24x24xf32>
    %cst_31 = arith.constant dense<0.000000e+00> : vector<1xf32>
    %75 = vector.multi_reduction <add>, %74, %cst_31 [1, 2, 3] : vector<1x1x24x24xf32> to vector<1xf32>
    %76 = vector.shape_cast %75 : vector<1xf32> to vector<1x1x1x1xf32>
    %77 = vector.extract %76[0, 0, 0, 0] : f32 from vector<1x1x1x1xf32>
    %78 = tpu.iota {dimensions = array<i32: 0>} : vector<8x128xi32>
    %c0_i32 = arith.constant 0 : i32
    %79 = vector.broadcast %c0_i32 : i32 to vector<8x128xi32>
    %80 = arith.cmpi eq, %78, %79 : vector<8x128xi32>
    %c1_i32 = arith.constant 1 : i32
    %81 = vector.broadcast %c1_i32 : i32 to vector<8x128xi32>
    %82 = arith.cmpi eq, %78, %81 : vector<8x128xi32>
    %c2_i32 = arith.constant 2 : i32
    %83 = vector.broadcast %c2_i32 : i32 to vector<8x128xi32>
    %84 = arith.cmpi eq, %78, %83 : vector<8x128xi32>
    %cst_32 = arith.constant 0.000000e+00 : f32
    %85 = vector.broadcast %51 : f32 to vector<8x128xf32>
    %86 = vector.broadcast %cst_32 : f32 to vector<8x128xf32>
    %87 = arith.select %84, %85, %86 : vector<8x128xi1>, vector<8x128xf32>
    %88 = vector.broadcast %77 : f32 to vector<8x128xf32>
    %89 = arith.select %82, %88, %87 : vector<8x128xi1>, vector<8x128xf32>
    %90 = vector.broadcast %43 : f32 to vector<8x128xf32>
    %91 = arith.select %80, %90, %89 : vector<8x128xi1>, vector<8x128xf32>
    %c0_33 = arith.constant 0 : index
    %c0_34 = arith.constant 0 : index
    %c0_35 = arith.constant 0 : index
    %92 = vector.load %arg9[%c0_33, %c0_34, %c0_35] : memref<1x8x128xf32, #tpu.memory_space<vmem>>, vector<1x8x128xf32>
    %93 = vector.shape_cast %92 : vector<1x8x128xf32> to vector<8x128xf32>
    %94 = vector.shape_cast %91 : vector<8x128xf32> to vector<1x8x128xf32>
    tpu.vector_store %arg9[%c0_33, %c0_34, %c0_35], %94 {strides = array<i32>} : memref<1x8x128xf32, #tpu.memory_space<vmem>>, vector<1x8x128xf32>,
    return
  }
  func.func @transform_0(%arg0: i32) -> (i32, i32, i32) {
    %c0_i32 = arith.constant 0 : i32
    %c0_i32_0 = arith.constant 0 : i32
    %c0_i32_1 = arith.constant 0 : i32
    return %arg0, %c0_i32, %c0_i32_0 : i32, i32, i32
  }
  func.func @transform_1(%arg0: i32) -> (i32, i32, i32) {
    %c0_i32 = arith.constant 0 : i32
    %c0_i32_0 = arith.constant 0 : i32
    %c0_i32_1 = arith.constant 0 : i32
    return %arg0, %c0_i32, %c0_i32_0 : i32, i32, i32
  }
  func.func @transform_2(%arg0: i32) -> (i32, i32) {
    %c0_i32 = arith.constant 0 : i32
    %c0_i32_0 = arith.constant 0 : i32
    %c0_i32_1 = arith.constant 0 : i32
    return %c0_i32, %c0_i32_0 : i32, i32
  }
  func.func @transform_3(%arg0: i32) -> (i32, i32) {
    %c0_i32 = arith.constant 0 : i32
    %c0_i32_0 = arith.constant 0 : i32
    %c0_i32_1 = arith.constant 0 : i32
    return %c0_i32, %c0_i32_0 : i32, i32
  }
  func.func @transform_4(%arg0: i32) -> (i32, i32) {
    %c0_i32 = arith.constant 0 : i32
    %c0_i32_0 = arith.constant 0 : i32
    %c0_i32_1 = arith.constant 0 : i32
    return %c0_i32, %c0_i32_0 : i32, i32
  }
  func.func @transform_5(%arg0: i32) -> (i32, i32) {
    %c0_i32 = arith.constant 0 : i32
    %c0_i32_0 = arith.constant 0 : i32
    %c0_i32_1 = arith.constant 0 : i32
    return %c0_i32, %c0_i32_0 : i32, i32
  }
  func.func @transform_6(%arg0: i32) -> (i32, i32) {
    %c0_i32 = arith.constant 0 : i32
    %c0_i32_0 = arith.constant 0 : i32
    %c0_i32_1 = arith.constant 0 : i32
    return %c0_i32, %c0_i32_0 : i32, i32
  }
  func.func @transform_7(%arg0: i32) -> (i32, i32) {
    %c0_i32 = arith.constant 0 : i32
    %c0_i32_0 = arith.constant 0 : i32
    %c0_i32_1 = arith.constant 0 : i32
    return %c0_i32, %c0_i32_0 : i32, i32
  }
  func.func @transform_8(%arg0: i32) -> (i32, i32, i32) {
    %c0_i32 = arith.constant 0 : i32
    %c0_i32_0 = arith.constant 0 : i32
    %c0_i32_1 = arith.constant 0 : i32
    return %arg0, %c0_i32, %c0_i32_0 : i32, i32, i32
  }
}

</mosaic_0001>

<llo_original>
// kernel: trainer_forward.1
$region0: #{trainer_forward.1}
  #allocation0 [shape = 'u32[]', space=smem, size = 0x4, offset = 0x4, fixed_abs, tag = 'smem constant byte address 0x4 - core index']
  #allocation1 [shape = 'u32[72,128]{1,0:T(1,128)}', space=vmem, size = 0x9000, scoped, tag = 'internal scratch']
  %s0 = inlined_call_operand.vmem [shape: f32[2,16,64], index: 0, kind: input, shape index: {}]
  %s1 = inlined_call_operand.vmem [shape: f32[2,16,64], index: 1, kind: input, shape index: {}]
  %s2 = inlined_call_operand.vmem [shape: f32[64,64], index: 2, kind: input, shape index: {}]
  %s3 = inlined_call_operand.vmem [shape: f32[1,64], index: 3, kind: input, shape index: {}]
  %s4 = inlined_call_operand.vmem [shape: bf16[64,32], index: 4, kind: input, shape index: {}]
  %s5 = inlined_call_operand.vmem [shape: f32[24,32], index: 5, kind: input, shape index: {}]
  %s6 = inlined_call_operand.vmem [shape: bf16[32,32], index: 6, kind: input, shape index: {}]
  %s7 = inlined_call_operand.vmem [shape: bf16[32,32], index: 7, kind: input, shape index: {}]
  %s8 = inlined_call_operand.vmem [shape: f32[2,8,128], index: 8, kind: output, shape index: {}]
  %s9 = sld [smem:[#allocation0]]
  $region65: #{trainer_forward.1} parent=0
    _
  %s11 = ssub.s32 1, %s9
  %s12 = scalar_select 0, %s11, %s9
  loop: start=0, step=1, limit=4
  $region2: #{trainer_forward.1} parent=0 // loop_pre_header
    _
  $region3: #{trainer_forward.1} parent=0 // loop_header
    %s14 = sphi 0, %s18
    %p15 = scmp.ge.s32.totalorder %s14, 4
    %s24 = sphi 0, %s26
    %s27 = sphi 0, %s24
    %s28 = sphi 0, %s27
    %s44 = sphi 0, %s28
    %s50 = sphi 0, %s52
    %s53 = sphi 0, %s50
    %s54 = sphi 0, %s53
    %s70 = sphi 0, %s54
    %s74 = sphi 0, %s74
    %s76 = sphi 0, %s74
    %s77 = sphi 0, %s76
    %s91 = sphi 0, %s77
    %s95 = sphi 0, %s95
    %s97 = sphi 0, %s95
    %s98 = sphi 0, %s97
    %s112 = sphi 0, %s98
    %s116 = sphi 0, %s116
    %s118 = sphi 0, %s116
    %s119 = sphi 0, %s118
    %s133 = sphi 0, %s119
    %s137 = sphi 0, %s137
    %s139 = sphi 0, %s137
    %s140 = sphi 0, %s139
    %s154 = sphi 0, %s140
    %s158 = sphi 0, %s158
    %s160 = sphi 0, %s158
    %s161 = sphi 0, %s160
    %s175 = sphi 0, %s161
    %s179 = sphi 0, %s179
    %s181 = sphi 0, %s179
    %s182 = sphi 0, %s181
    %s196 = sphi 0, %s182
    %s202 = sphi 0, %s204
    %s205 = sphi 0, %s202
    %s206 = sphi 0, %s205
    %s222 = sphi 0, %s206
  $region4: #{trainer_forward.1} parent=0 // loop_header_branch
    %17 = sbr.rel (%p15) target = $region8
  $region5: #{trainer_forward.1} parent=0 // loop_body
    %s19 = ssub.s32 %s14, 1
    %s20 = ssub.s32 %s14, 2
    %s21 = sadd.s32 %s14, 1
    %s22 = ssub.s32 %s14, %s21
    %p23 = scmp.eq.s32.totalorder %s22, 0
    %s25 = sadd.s32 %s24, 1
    %s26 = scalar_select %p23, %s24, %s25
    %p29 = pneg %p23
    %p30 = scmp.eq.s32.totalorder %s14, 1
    %p31 = por %p29, %p30
    %p32 = scmp.ne.s32.totalorder %s24, %s27
    %p33 = scmp.eq.s32.totalorder %s14, 0
    %p34 = por %p32, %p33
    %p35 = scmp.ne.s32.totalorder %s24, %s27
    %p36 = scmp.eq.s32.totalorder %s19, 1
    %p37 = por %p35, %p36
    %p38 = scmp.ne.s32.totalorder %s27, %s28
    %p39 = scmp.eq.s32.totalorder %s19, 0
    %p40 = por %p38, %p39
    %p41 = scmp.ne.s32.totalorder %s27, %s28
    %p42 = scmp.eq.s32.totalorder %s20, 1
    %p43 = por %p41, %p42
    %p45 = scmp.ne.s32.totalorder %s28, %s44
    %p46 = scmp.eq.s32.totalorder %s20, 0
    %p47 = por %p45, %p46
    %s48 = ssub.s32 %s14, %s21
    %p49 = scmp.eq.s32.totalorder %s48, 0
    %s51 = sadd.s32 %s50, 1
    %s52 = scalar_select %p49, %s50, %s51
    %p55 = pneg %p49
    %p56 = scmp.eq.s32.totalorder %s14, 1
    %p57 = por %p55, %p56
    %p58 = scmp.ne.s32.totalorder %s50, %s53
    %p59 = scmp.eq.s32.totalorder %s14, 0
    %p60 = por %p58, %p59
    %p61 = scmp.ne.s32.totalorder %s50, %s53
    %p62 = scmp.eq.s32.totalorder %s19, 1
    %p63 = por %p61, %p62
    %p64 = scmp.ne.s32.totalorder %s53, %s54
    %p65 = scmp.eq.s32.totalorder %s19, 0
    %p66 = por %p64, %p65
    %p67 = scmp.ne.s32.totalorder %s53, %s54
    %p68 = scmp.eq.s32.totalorder %s20, 1
    %p69 = por %p67, %p68
    %p71 = scmp.ne.s32.totalorder %s54, %s70
    %p72 = scmp.eq.s32.totalorder %s20, 0
    %p73 = por %p71, %p72
    %s75 = sadd.s32 %s74, 1
    %p78 = scmp.eq.s32.totalorder %s14, 1
    %p79 = scmp.ne.s32.totalorder %s74, %s76
    %p80 = scmp.eq.s32.totalorder %s14, 0
    %p81 = por %p79, %p80
    %p82 = scmp.ne.s32.totalorder %s74, %s76
    %p83 = scmp.eq.s32.totalorder %s19, 1
    %p84 = por %p82, %p83
    %p85 = scmp.ne.s32.totalorder %s76, %s77
    %p86 = scmp.eq.s32.totalorder %s19, 0
    %p87 = por %p85, %p86
    %p88 = scmp.ne.s32.totalorder %s76, %s77
    %p89 = scmp.eq.s32.totalorder %s20, 1
    %p90 = por %p88, %p89
    %p92 = scmp.ne.s32.totalorder %s77, %s91
    %p93 = scmp.eq.s32.totalorder %s20, 0
    %p94 = por %p92, %p93
    %s96 = sadd.s32 %s95, 1
    %p99 = scmp.eq.s32.totalorder %s14, 1
    %p100 = scmp.ne.s32.totalorder %s95, %s97
    %p101 = scmp.eq.s32.totalorder %s14, 0
    %p102 = por %p100, %p101
    %p103 = scmp.ne.s32.totalorder %s95, %s97
    %p104 = scmp.eq.s32.totalorder %s19, 1
    %p105 = por %p103, %p104
    %p106 = scmp.ne.s32.totalorder %s97, %s98
    %p107 = scmp.eq.s32.totalorder %s19, 0
    %p108 = por %p106, %p107
    %p109 = scmp.ne.s32.totalorder %s97, %s98
    %p110 = scmp.eq.s32.totalorder %s20, 1
    %p111 = por %p109, %p110
    %p113 = scmp.ne.s32.totalorder %s98, %s112
    %p114 = scmp.eq.s32.totalorder %s20, 0
    %p115 = por %p113, %p114
    %s117 = sadd.s32 %s116, 1
    %p120 = scmp.eq.s32.totalorder %s14, 1
    %p121 = scmp.ne.s32.totalorder %s116, %s118
    %p122 = scmp.eq.s32.totalorder %s14, 0
    %p123 = por %p121, %p122
    %p124 = scmp.ne.s32.totalorder %s116, %s118
    %p125 = scmp.eq.s32.totalorder %s19, 1
    %p126 = por %p124, %p125
    %p127 = scmp.ne.s32.totalorder %s118, %s119
    %p128 = scmp.eq.s32.totalorder %s19, 0
    %p129 = por %p127, %p128
    %p130 = scmp.ne.s32.totalorder %s118, %s119
    %p131 = scmp.eq.s32.totalorder %s20, 1
    %p132 = por %p130, %p131
    %p134 = scmp.ne.s32.totalorder %s119, %s133
    %p135 = scmp.eq.s32.totalorder %s20, 0
    %p136 = por %p134, %p135
    %s138 = sadd.s32 %s137, 1
    %p141 = scmp.eq.s32.totalorder %s14, 1
    %p142 = scmp.ne.s32.totalorder %s137, %s139
    %p143 = scmp.eq.s32.totalorder %s14, 0
    %p144 = por %p142, %p143
    %p145 = scmp.ne.s32.totalorder %s137, %s139
    %p146 = scmp.eq.s32.totalorder %s19, 1
    %p147 = por %p145, %p146
    %p148 = scmp.ne.s32.totalorder %s139, %s140
    %p149 = scmp.eq.s32.totalorder %s19, 0
    %p150 = por %p148, %p149
    %p151 = scmp.ne.s32.totalorder %s139, %s140
    %p152 = scmp.eq.s32.totalorder %s20, 1
    %p153 = por %p151, %p152
    %p155 = scmp.ne.s32.totalorder %s140, %s154
    %p156 = scmp.eq.s32.totalorder %s20, 0
    %p157 = por %p155, %p156
    %s159 = sadd.s32 %s158, 1
    %p162 = scmp.eq.s32.totalorder %s14, 1
    %p163 = scmp.ne.s32.totalorder %s158, %s160
    %p164 = scmp.eq.s32.totalorder %s14, 0
    %p165 = por %p163, %p164
    %p166 = scmp.ne.s32.totalorder %s158, %s160
    %p167 = scmp.eq.s32.totalorder %s19, 1
    %p168 = por %p166, %p167
    %p169 = scmp.ne.s32.totalorder %s160, %s161
    %p170 = scmp.eq.s32.totalorder %s19, 0
    %p171 = por %p169, %p170
    %p172 = scmp.ne.s32.totalorder %s160, %s161
    %p173 = scmp.eq.s32.totalorder %s20, 1
    %p174 = por %p172, %p173
    %p176 = scmp.ne.s32.totalorder %s161, %s175
    %p177 = scmp.eq.s32.totalorder %s20, 0
    %p178 = por %p176, %p177
    %s180 = sadd.s32 %s179, 1
    %p183 = scmp.eq.s32.totalorder %s14, 1
    %p184 = scmp.ne.s32.totalorder %s179, %s181
    %p185 = scmp.eq.s32.totalorder %s14, 0
    %p186 = por %p184, %p185
    %p187 = scmp.ne.s32.totalorder %s179, %s181
    %p188 = scmp.eq.s32.totalorder %s19, 1
    %p189 = por %p187, %p188
    %p190 = scmp.ne.s32.totalorder %s181, %s182
    %p191 = scmp.eq.s32.totalorder %s19, 0
    %p192 = por %p190, %p191
    %p193 = scmp.ne.s32.totalorder %s181, %s182
    %p194 = scmp.eq.s32.totalorder %s20, 1
    %p195 = por %p193, %p194
    %p197 = scmp.ne.s32.totalorder %s182, %s196
    %p198 = scmp.eq.s32.totalorder %s20, 0
    %p199 = por %p197, %p198
    %s200 = ssub.s32 %s14, %s21
    %p201 = scmp.eq.s32.totalorder %s200, 0
    %s203 = sadd.s32 %s202, 1
    %s204 = scalar_select %p201, %s202, %s203
    %p207 = pneg %p201
    %p208 = scmp.eq.s32.totalorder %s14, 1
    %p209 = por %p207, %p208
    %p210 = scmp.ne.s32.totalorder %s202, %s205
    %p211 = scmp.eq.s32.totalorder %s14, 0
    %p212 = por %p210, %p211
    %p213 = scmp.ne.s32.totalorder %s202, %s205
    %p214 = scmp.eq.s32.totalorder %s19, 1
    %p215 = por %p213, %p214
    %p216 = scmp.ne.s32.totalorder %s205, %s206
    %p217 = scmp.eq.s32.totalorder %s19, 0
    %p218 = por %p216, %p217
    %p219 = scmp.ne.s32.totalorder %s205, %s206
    %p220 = scmp.eq.s32.totalorder %s20, 1
    %p221 = por %p219, %p220
    %p223 = scmp.ne.s32.totalorder %s206, %s222
    %p224 = scmp.eq.s32.totalorder %s20, 0
    %p225 = por %p223, %p224
    %p226 = scmp.le.s32.totalorder 1, %s14
    %p227 = scmp.lt.s32.totalorder %s14, 3
    %p228 = pnand %p226, %p227
    %p229 = pneg %p228
    // Predicated region
    $region9: #{trainer_forward.1} parent=5 // pred_check
      _
    $region10: #{trainer_forward.1} parent=5 // pred_check_branch
      %231 = sbr.rel (%p228) target = $region12
    $region11: #{trainer_forward.1} parent=5 // pred_region
      %s232 = ssub.s32 %s14, 1
      // Predicated region
      $region13: #{trainer_forward.1} parent=11 // pred_check
        %p233 = pneg %p87
      $region14: #{trainer_forward.1} parent=11 // pred_check_branch
        %235 = sbr.rel (%p233) target = $region16
      $region15: #{trainer_forward.1} parent=11 // pred_region
        _
      $region16: #{trainer_forward.1} parent=11 // pred_fallthru
        _
      // Predicated region
      $region17: #{trainer_forward.1} parent=11 // pred_check
        %p236 = pneg %p108
      $region18: #{trainer_forward.1} parent=11 // pred_check_branch
        %238 = sbr.rel (%p236) target = $region20
      $region19: #{trainer_forward.1} parent=11 // pred_region
        _
      $region20: #{trainer_forward.1} parent=11 // pred_fallthru
        _
      // Predicated region
      $region21: #{trainer_forward.1} parent=11 // pred_check
        %p239 = pneg %p129
      $region22: #{trainer_forward.1} parent=11 // pred_check_branch
        %241 = sbr.rel (%p239) target = $region24
      $region23: #{trainer_forward.1} parent=11 // pred_region
        _
      $region24: #{trainer_forward.1} parent=11 // pred_fallthru
        _
      // Predicated region
      $region25: #{trainer_forward.1} parent=11 // pred_check
        %p242 = pneg %p150
      $region26: #{trainer_forward.1} parent=11 // pred_check_branch
        %244 = sbr.rel (%p242) target = $region28
      $region27: #{trainer_forward.1} parent=11 // pred_region
        _
      $region28: #{trainer_forward.1} parent=11 // pred_fallthru
        _
      // Predicated region
      $region29: #{trainer_forward.1} parent=11 // pred_check
        %p245 = pneg %p171
      $region30: #{trainer_forward.1} parent=11 // pred_check_branch
        %247 = sbr.rel (%p245) target = $region32
      $region31: #{trainer_forward.1} parent=11 // pred_region
        _
      $region32: #{trainer_forward.1} parent=11 // pred_fallthru
        _
      // Predicated region
      $region33: #{trainer_forward.1} parent=11 // pred_check
        %p248 = pneg %p192
      $region34: #{trainer_forward.1} parent=11 // pred_check_branch
        %250 = sbr.rel (%p248) target = $region36
      $region35: #{trainer_forward.1} parent=11 // pred_region
        _
      $region36: #{trainer_forward.1} parent=11 // pred_fallthru
        _
    $region12: #{trainer_forward.1} parent=5 // pred_fallthru
      _
    %p251 = scmp.lt.s32.totalorder %s14, 2
    // Predicated region
    $region37: #{trainer_forward.1} parent=5 // pred_check
      %p252 = pneg %p251
    $region38: #{trainer_forward.1} parent=5 // pred_check_branch
      %254 = sbr.rel (%p252) target = $region40
    $region39: #{trainer_forward.1} parent=5 // pred_region
      // Predicated region
      $region41: #{trainer_forward.1} parent=39 // pred_check
        %p255 = pneg %p34
      $region42: #{trainer_forward.1} parent=39 // pred_check_branch
        %257 = sbr.rel (%p255) target = $region44
      $region43: #{trainer_forward.1} parent=39 // pred_region
        %p258 = scmp.lt.s32.totalorder %s14, 1
        %s259 = scalar_select %p258, %s14, 1
        %s260 = smul.addr %s259, 2
        %s261 = smul.addr %s260, 8
        %s262 = scalar_lea.vmem %s0, %s261
      $region44: #{trainer_forward.1} parent=39 // pred_fallthru
        _
      // Predicated region
      $region45: #{trainer_forward.1} parent=39 // pred_check
        %p263 = pneg %p60
      $region46: #{trainer_forward.1} parent=39 // pred_check_branch
        %265 = sbr.rel (%p263) target = $region48
      $region47: #{trainer_forward.1} parent=39 // pred_region
        %p266 = scmp.lt.s32.totalorder %s14, 1
        %s267 = scalar_select %p266, %s14, 1
        %s268 = smul.addr %s267, 2
        %s269 = smul.addr %s268, 8
        %s270 = scalar_lea.vmem %s1, %s269
      $region48: #{trainer_forward.1} parent=39 // pred_fallthru
        _
    $region40: #{trainer_forward.1} parent=5 // pred_fallthru
      _
    %p271 = scmp.le.s32.totalorder 1, %s14
    %p272 = scmp.lt.s32.totalorder %s14, 3
    %p273 = pnand %p271, %p272
    %p274 = pneg %p273
    // Predicated region
    $region49: #{trainer_forward.1} parent=5 // pred_check
      _
    $region50: #{trainer_forward.1} parent=5 // pred_check_branch
      %276 = sbr.rel (%p273) target = $region52
    $region51: #{trainer_forward.1} parent=5 // pred_region
      %s277 = ssub.s32 %s14, 1
      %p278 = scmp.lt.s32.totalorder %s19, 1
      %s279 = scalar_select %p278, %s19, 1
      %s280 = smul.addr %s279, 2
      %s281 = smul.addr %s280, 8
      %s282 = scalar_lea.vmem %s0, %s281
      %p283 = pneg %p40
      %p284 = pneg %p37
      %p285 = scmp.lt.s32.totalorder %s19, 1
      %s286 = scalar_select %p285, %s19, 1
      %s287 = smul.addr %s286, 2
      %s288 = smul.addr %s287, 8
      %s289 = scalar_lea.vmem %s1, %s288
      %p290 = pneg %p66
      %p291 = pneg %p63
      %p292 = pneg %p87
      %p293 = pneg %p84
      %p294 = pneg %p108
      %p295 = pneg %p105
      %p296 = pneg %p129
      %p297 = pneg %p126
      %p298 = pneg %p150
      %p299 = pneg %p147
      %p300 = pneg %p171
      %p301 = pneg %p168
      %p302 = pneg %p192
      %p303 = pneg %p189
      %p304 = pneg %p218
      %p305 = pneg %p215
      %p306 = scmp.lt.s32.totalorder %s19, 1
      %s307 = scalar_select %p306, %s19, 1
      %s308 = smul.addr %s307, 8
      %s309 = scalar_lea.vmem %s8, %s308
      %p310 = scmp.lt.s32.totalorder %s19, 1
      %s311 = scalar_select %p310, %s19, 1
      %s312 = smul.addr %s311, 2
      %s313 = smul.addr %s312, 8
      %s314 = scalar_lea.vmem %s0, %s313
      %p315 = scmp.lt.s32.totalorder %s19, 1
      %s316 = scalar_select %p315, %s19, 1
      %s317 = smul.addr %s316, 2
      %s318 = smul.addr %s317, 8
      %s319 = scalar_lea.vmem %s1, %s318
      %p320 = scmp.lt.s32.totalorder %s19, 1
      %s321 = scalar_select %p320, %s19, 1
      %s322 = smul.addr %s321, 8
      %s323 = scalar_lea.vmem %s8, %s322
      %v325 = vld [vmem:[%s314] sm:$0xff]
      %v326 = vld [vmem:[%s314 + $0x8] sm:$0xff]
      %v327 = vld [vmem:[%s319] sm:$0xff]
      %v328 = vld [vmem:[%s319 + $0x8] sm:$0xff]
      %v329 = vld [vmem:[%s2] sm:$0xff]
      %v330 = vld [vmem:[%s2 + $0x8] sm:$0xff]
      %v331 = vld [vmem:[%s2 + $0x10] sm:$0xff]
      %v332 = vld [vmem:[%s2 + $0x18] sm:$0xff]
      %v333 = vld [vmem:[%s2 + $0x20] sm:$0xff]
      %v334 = vld [vmem:[%s2 + $0x28] sm:$0xff]
      %v335 = vld [vmem:[%s2 + $0x30] sm:$0xff]
      %v336 = vld [vmem:[%s2 + $0x38] sm:$0xff]
      %v337 = vld [vmem:[%s3] sm:$0x1]
      %v339 = vperm.slane %v337, 0
      %vm341 = vcmask 523264
      %v343 = vsel %vm341, %v325, 0
      %v346 = vsel %vm341, %v326, 0
      %v349 = vsel %vm341, %v327, 0
      %v352 = vsel %vm341, %v328, 0
      %354 = vmatpush.msra.mxu0 0.0
      %355 = vmatpush.msra.mxu0 0.0
      %356 = vmatpush.msra.mxu0 0.0
      %357 = vmatpush.msra.mxu0 0.0
      %358 = vmatpush.msra.mxu0 0.0
      %359 = vmatpush.msra.mxu0 0.0
      %360 = vmatpush.msra.mxu0 0.0
      %361 = vmatpush.msra.mxu0 0.0
      %362 = vmatpush.msra.mxu0 %v336
      %363 = vmatpush.msra.mxu0 %v335
      %364 = vmatpush.msra.mxu0 %v334
      %365 = vmatpush.msra.mxu0 %v333
      %366 = vmatpush.msra.mxu0 %v332
      %367 = vmatpush.msra.mxu0 %v331
      %368 = vmatpush.msra.mxu0 %v330
      %369 = vmatpush.msra.mxu0 %v329
      %370 = vmatmul.f32.gmra.mxu0 %v343
      %v371 = vpop.f32.mrf.mxu0
      %v372 = vadd.f32 %v339, %v371
      %373 = vmatmul.f32.gmra.mxu0 %v346
      %v374 = vpop.f32.mrf.mxu0
      %v375 = vadd.f32 %v339, %v374
      %376 = vmatmul.f32.gmra.mxu0 %v349
      %v377 = vpop.f32.mrf.mxu0
      %v378 = vadd.f32 %v339, %v377
      %379 = vmatmul.f32.gmra.mxu0 %v352
      %v380 = vpop.f32.mrf.mxu0
      %v381 = vadd.f32 %v339, %v380
      %382 = vdwg.mxu0
      %v383 = vtanh.pop %v372
      %v384 = vtanh.pop %v375
      %v385 = vtanh.pop %v378
      %v386 = vtanh.pop %v381
      %v387 = vpack.c.bf16 %v326, %v325
      %v388 = vpack.c.bf16 %v328, %v327
      %v389 = vpack.c.bf16 %v384, %v383
      %v390 = vpack.c.bf16 %v386, %v385
      %v391 = vld [vmem:[%s4] sm:$0xf]
      %v392 = vld [vmem:[%s4 + $0x4] sm:$0xf]
      %v393 = vld [vmem:[%s4 + $0x8] sm:$0xf]
      %v394 = vld [vmem:[%s4 + $0xc] sm:$0xf]
      %v395 = vld [vmem:[%s4 + $0x10] sm:$0xf]
      %v396 = vld [vmem:[%s4 + $0x14] sm:$0xf]
      %v397 = vld [vmem:[%s4 + $0x18] sm:$0xf]
      %v398 = vld [vmem:[%s4 + $0x1c] sm:$0xf]
      %v407 = vunpack.c.l.b16 %v391
      %v408 = vunpack.c.l.b16 %v392
      %v409 = vunpack.c.l.b16 %v393
      %v410 = vunpack.c.l.b16 %v394
      %v411 = vunpack.c.l.b16 %v395
      %v412 = vunpack.c.l.b16 %v396
      %v413 = vunpack.c.l.b16 %v397
      %v414 = vunpack.c.l.b16 %v398
      %v415 = vpack.c.b16 %v408, %v407
      %v416 = vpack.c.b16 %v410, %v409
      %v417 = vpack.c.b16 %v412, %v411
      %v418 = vpack.c.b16 %v414, %v413
      %v424 = vsel %vm341, %v387, 0
      %v427 = vsel %vm341, %v388, 0
      %v430 = vsel %vm341, %v389, 0
      %v433 = vsel %vm341, %v390, 0
      %435 = vmatpush.bf16.msra.mxu0 0
      %436 = vmatpush.bf16.msra.mxu0 0
      %437 = vmatpush.bf16.msra.mxu0 0
      %438 = vmatpush.bf16.msra.mxu0 0
      %439 = vmatpush.bf16.msra.mxu0 %v418
      %440 = vmatpush.bf16.msra.mxu0 %v417
      %441 = vmatpush.bf16.msra.mxu0 %v416
      %442 = vmatpush.bf16.msra.mxu0 %v415
      %443 = vmatmul.bf16.gmra.mxu0 %v424
      %v444 = vpop.f32.mrf.mxu0
      %v445 = vadd.f32 0.0, %v444
      %v446 = vpop.f32.mrf.mxu0
      %v447 = vadd.f32 0.0, %v446
      %448 = vmatmul.bf16.gmra.mxu0 %v427
      %v449 = vpop.f32.mrf.mxu0
      %v450 = vadd.f32 0.0, %v449
      %v451 = vpop.f32.mrf.mxu0
      %v452 = vadd.f32 0.0, %v451
      %453 = vmatmul.bf16.gmra.mxu0 %v430
      %v454 = vpop.f32.mrf.mxu0
      %v455 = vadd.f32 0.0, %v454
      %v456 = vpop.f32.mrf.mxu0
      %v457 = vadd.f32 0.0, %v456
      %458 = vmatmul.bf16.gmra.mxu0 %v433
      %v459 = vpop.f32.mrf.mxu0
      %v460 = vadd.f32 0.0, %v459
      %v461 = vpop.f32.mrf.mxu0
      %v462 = vadd.f32 0.0, %v461
      %463 = vdwg.mxu0
      %vm464 = vcmask 261120
      %v465 = vsel %vm464, %v445, 0.0
      %v466 = vsel %vm464, %v447, 0.0
      %v467 = vadd.f32 %v465, %v466
      %v468 = vrot.slane %v467, 4
      %v469 = vadd.f32 %v467, %v468
      %v470 = vrot.slane %v469, 2
      %v471 = vadd.f32 %v469, %v470
      %v472 = vrot.slane %v471, 1
      %v473 = vadd.f32 %v471, %v472
      %v474 = vsel %vm464, %v450, 0.0
      %v475 = vsel %vm464, %v452, 0.0
      %v476 = vadd.f32 %v474, %v475
      %v477 = vrot.slane %v476, 4
      %v478 = vadd.f32 %v476, %v477
      %v479 = vrot.slane %v478, 2
      %v480 = vadd.f32 %v478, %v479
      %v481 = vrot.slane %v480, 1
      %v482 = vadd.f32 %v480, %v481
      %v483 = vsel %vm464, %v455, 0.0
      %v484 = vsel %vm464, %v457, 0.0
      %v485 = vadd.f32 %v483, %v484
      %v486 = vrot.slane %v485, 4
      %v487 = vadd.f32 %v485, %v486
      %v488 = vrot.slane %v487, 2
      %v489 = vadd.f32 %v487, %v488
      %v490 = vrot.slane %v489, 1
      %v491 = vadd.f32 %v489, %v490
      %v492 = vsel %vm464, %v460, 0.0
      %v493 = vsel %vm464, %v462, 0.0
      %v494 = vadd.f32 %v492, %v493
      %v495 = vrot.slane %v494, 4
      %v496 = vadd.f32 %v494, %v495
      %v497 = vrot.slane %v496, 2
      %v498 = vadd.f32 %v496, %v497
      %v499 = vrot.slane %v498, 1
      %v500 = vadd.f32 %v498, %v499
      %v501 = vrcp.pop 16.0
      %v502 = vmul.f32 16.0, %v501
      %v503 = vsub.f32 1.0, %v502
      %v504 = vmul.f32 %v501, %v503
      %v505 = vadd.f32 %v501, %v504
      %vm506 = vweird.f32 %v501
      %v507 = vsel %vm506, %v501, %v505
      %v508 = vmul.f32 %v473, %v507
      %v509 = vmul.f32 %v482, %v507
      %v510 = vmul.f32 %v491, %v507
      %v511 = vmul.f32 %v500, %v507
      %vm520 = vcmask 1040384
      %v521 = vrot.slane %v445, 7
      %v522 = vrot.slane %v447, 7
      %v523 = vsel %vm520, %v521, %v522
      %v524 = vrot.slane %v450, 7
      %v525 = vrot.slane %v452, 7
      %v526 = vsel %vm520, %v524, %v525
      %v527 = vrot.slane %v455, 7
      %v528 = vrot.slane %v457, 7
      %v529 = vsel %vm520, %v527, %v528
      %v530 = vrot.slane %v460, 7
      %v531 = vrot.slane %v462, 7
      %v532 = vsel %vm520, %v530, %v531
      %v545 = vsel %vm520, %v508, %v521
      %v546 = vsel %vm520, %v509, %v524
      %v547 = vsel %vm520, %v510, %v527
      %v548 = vsel %vm520, %v511, %v530
      %v549 = vsel %vm520, %v522, 0.0
      %v550 = vsel %vm520, %v525, 0.0
      %v551 = vsel %vm520, %v528, 0.0
      %v552 = vsel %vm520, %v531, 0.0
      %v553 = vld [vmem:[%s5] sm:$0xff]
      %v554 = vld [vmem:[%s5 + $0x8] sm:$0xff]
      %v555 = vld [vmem:[%s5 + $0x10] sm:$0xff]
      %v556 = vadd.f32 %v545, %v553
      %v557 = vadd.f32 %v523, %v554
      %v558 = vadd.f32 %v549, %v555
      %v559 = vadd.f32 %v546, %v553
      %v560 = vadd.f32 %v526, %v554
      %v561 = vadd.f32 %v550, %v555
      %v562 = vadd.f32 %v547, %v553
      %v563 = vadd.f32 %v529, %v554
      %v564 = vadd.f32 %v551, %v555
      %v565 = vadd.f32 %v548, %v553
      %v566 = vadd.f32 %v532, %v554
      %v567 = vadd.f32 %v552, %v555
      %v568 = vpack.c.bf16 %v557, %v556
      %v569 = vpack.c.bf16 %v559, %v558
      %v570 = vpack.c.bf16 %v561, %v560
      %v571 = vpack.c.bf16 %v563, %v562
      %v572 = vpack.c.bf16 %v565, %v564
      %v573 = vpack.c.bf16 %v567, %v566
      %v574 = vld [vmem:[%s6] sm:$0xf]
      %v575 = vld [vmem:[%s6 + $0x4] sm:$0xf]
      %v576 = vld [vmem:[%s6 + $0x8] sm:$0xf]
      %v577 = vld [vmem:[%s6 + $0xc] sm:$0xf]
      %v582 = vunpack.c.l.b16 %v574
      %v583 = vunpack.c.l.b16 %v575
      %v584 = vunpack.c.l.b16 %v576
      %v585 = vunpack.c.l.b16 %v577
      %v586 = vpack.c.b16 %v583, %v582
      %v587 = vpack.c.b16 %v585, %v584
      %v591 = vsel %vm464, %v568, 0
      %v594 = vsel %vm464, %v569, 0
      %v597 = vsel %vm464, %v570, 0
      %v600 = vsel %vm464, %v571, 0
      %v603 = vsel %vm464, %v572, 0
      %v606 = vsel %vm464, %v573, 0
      %608 = vmatpush.bf16.msra.mxu0 0
      %609 = vmatpush.bf16.msra.mxu0 0
      %610 = vmatpush.bf16.msra.mxu0 0
      %611 = vmatpush.bf16.msra.mxu0 0
      %612 = vmatpush.bf16.msra.mxu0 0
      %613 = vmatpush.bf16.msra.mxu0 0
      %614 = vmatpush.bf16.msra.mxu0 %v587
      %615 = vmatpush.bf16.msra.mxu0 %v586
      %616 = vmatmul.bf16.gmra.mxu0 %v591
      %v617 = vpop.f32.mrf.mxu0
      %v618 = vadd.f32 0.0, %v617
      %v619 = vpop.f32.mrf.mxu0
      %v620 = vadd.f32 0.0, %v619
      %621 = vmatmul.bf16.gmra.mxu0 %v594
      %v622 = vpop.f32.mrf.mxu0
      %v623 = vadd.f32 0.0, %v622
      %v624 = vpop.f32.mrf.mxu0
      %v625 = vadd.f32 0.0, %v624
      %626 = vmatmul.bf16.gmra.mxu0 %v597
      %v627 = vpop.f32.mrf.mxu0
      %v628 = vadd.f32 0.0, %v627
      %v629 = vpop.f32.mrf.mxu0
      %v630 = vadd.f32 0.0, %v629
      %631 = vmatmul.bf16.gmra.mxu0 %v600
      %v632 = vpop.f32.mrf.mxu0
      %v633 = vadd.f32 0.0, %v632
      %v634 = vpop.f32.mrf.mxu0
      %v635 = vadd.f32 0.0, %v634
      %636 = vmatmul.bf16.gmra.mxu0 %v603
      %v637 = vpop.f32.mrf.mxu0
      %v638 = vadd.f32 0.0, %v637
      %v639 = vpop.f32.mrf.mxu0
      %v640 = vadd.f32 0.0, %v639
      %641 = vmatmul.bf16.gmra.mxu0 %v606
      %v642 = vpop.f32.mrf.mxu0
      %v643 = vadd.f32 0.0, %v642
      %v644 = vpop.f32.mrf.mxu0
      %v645 = vadd.f32 0.0, %v644
      %646 = vdwg.mxu0
      %v647 = vtanh.pop %v618
      %v648 = vtanh.pop %v620
      %v649 = vtanh.pop %v623
      %v650 = vtanh.pop %v625
      %v651 = vtanh.pop %v628
      %v652 = vtanh.pop %v630
      %v653 = vtanh.pop %v633
      %v654 = vtanh.pop %v635
      %v655 = vtanh.pop %v638
      %v656 = vtanh.pop %v640
      %v657 = vtanh.pop %v643
      %v658 = vtanh.pop %v645
      %v659 = vpack.c.bf16 %v648, %v647
      %v660 = vpack.c.bf16 %v650, %v649
      %v661 = vpack.c.bf16 %v652, %v651
      %v662 = vpack.c.bf16 %v654, %v653
      %v663 = vpack.c.bf16 %v656, %v655
      %v664 = vpack.c.bf16 %v658, %v657
      %v665 = vld [vmem:[%s7] sm:$0xf]
      %v666 = vld [vmem:[%s7 + $0x4] sm:$0xf]
      %v667 = vld [vmem:[%s7 + $0x8] sm:$0xf]
      %v668 = vld [vmem:[%s7 + $0xc] sm:$0xf]
      %v673 = vunpack.c.l.b16 %v665
      %v674 = vunpack.c.l.b16 %v666
      %v675 = vunpack.c.l.b16 %v667
      %v676 = vunpack.c.l.b16 %v668
      %v677 = vpack.c.b16 %v674, %v673
      %v678 = vpack.c.b16 %v676, %v675
      %v682 = vsel %vm464, %v659, 0
      %v685 = vsel %vm464, %v660, 0
      %v688 = vsel %vm464, %v661, 0
      %v691 = vsel %vm464, %v662, 0
      %v694 = vsel %vm464, %v663, 0
      %v697 = vsel %vm464, %v664, 0
      %699 = vmatpush.bf16.msra.mxu0 0
      %700 = vmatpush.bf16.msra.mxu0 0
      %701 = vmatpush.bf16.msra.mxu0 0
      %702 = vmatpush.bf16.msra.mxu0 0
      %703 = vmatpush.bf16.msra.mxu0 0
      %704 = vmatpush.bf16.msra.mxu0 0
      %705 = vmatpush.bf16.msra.mxu0 %v678
      %706 = vmatpush.bf16.msra.mxu0 %v677
      %707 = vmatmul.bf16.gmra.mxu0 %v682
      %v708 = vpop.f32.mrf.mxu0
      %v709 = vadd.f32 0.0, %v708
      %v710 = vpop.f32.mrf.mxu0
      %v711 = vadd.f32 0.0, %v710
      %712 = vmatmul.bf16.gmra.mxu0 %v685
      %v713 = vpop.f32.mrf.mxu0
      %v714 = vadd.f32 0.0, %v713
      %v715 = vpop.f32.mrf.mxu0
      %v716 = vadd.f32 0.0, %v715
      %717 = vmatmul.bf16.gmra.mxu0 %v688
      %v718 = vpop.f32.mrf.mxu0
      %v719 = vadd.f32 0.0, %v718
      %v720 = vpop.f32.mrf.mxu0
      %v721 = vadd.f32 0.0, %v720
      %722 = vmatmul.bf16.gmra.mxu0 %v691
      %v723 = vpop.f32.mrf.mxu0
      %v724 = vadd.f32 0.0, %v723
      %v725 = vpop.f32.mrf.mxu0
      %v726 = vadd.f32 0.0, %v725
      %727 = vmatmul.bf16.gmra.mxu0 %v694
      %v728 = vpop.f32.mrf.mxu0
      %v729 = vadd.f32 0.0, %v728
      %v730 = vpop.f32.mrf.mxu0
      %v731 = vadd.f32 0.0, %v730
      %732 = vmatmul.bf16.gmra.mxu0 %v697
      %v733 = vpop.f32.mrf.mxu0
      %v734 = vadd.f32 0.0, %v733
      %v735 = vpop.f32.mrf.mxu0
      %v736 = vadd.f32 0.0, %v735
      %737 = vdwg.mxu0
      %v738 = vsub.f32 %v647, %v656
      %v739 = vmul.f32 %v738, %v738
      %vm740 = vcmask 253952
      %v741 = vsel %vm740, %v739, 0.0
      %742 = vadd.xlane.f32.xlu0 %v741
      %v743 = vpop.xlane.xlu0 %742
      %v744 = vrot.slane %v743, 4
      %v745 = vadd.f32 %v743, %v744
      %v746 = vrot.slane %v745, 2
      %v747 = vadd.f32 %v745, %v746
      %v748 = vrot.slane %v747, 1
      %v749 = vadd.f32 %v747, %v748
      %s750 = vtos %v749
      %v751 = vsub.f32 %v709, %v724
      %v752 = vsub.f32 %v711, %v726
      %v753 = vsub.f32 %v714, %v729
      %v754 = vmul.f32 %v751, %v751
      %v755 = vmul.f32 %v752, %v752
      %v756 = vmul.f32 %v753, %v753
      %v757 = vsel %vm464, %v754, 0.0
      %v758 = vsel %vm464, %v755, 0.0
      %v759 = vadd.f32 %v757, %v758
      %v760 = vsel %vm464, %v756, 0.0
      %v761 = vadd.f32 %v759, %v760
      %762 = vadd.xlane.f32.xlu0 %v761
      %v763 = vpop.xlane.xlu0 %762
      %v764 = vrot.slane %v763, 4
      %v765 = vadd.f32 %v763, %v764
      %v766 = vrot.slane %v765, 2
      %v767 = vadd.f32 %v765, %v766
      %v768 = vrot.slane %v767, 1
      %v769 = vadd.f32 %v767, %v768
      %s770 = vtos %v769
      %v771 = vmul.f32 %v716, %v716
      %v772 = vmul.f32 %v719, %v719
      %v773 = vmul.f32 %v721, %v721
      %v774 = vsel %vm464, %v771, 0.0
      %775 = vadd.xlane.f32.xlu0 %v774
      %v776 = vpop.xlane.xlu0 %775
      %v777 = vsel %vm464, %v772, 0.0
      %778 = vadd.xlane.f32.xlu0 %v777
      %v779 = vpop.xlane.xlu0 %778
      %v780 = vsel %vm464, %v773, 0.0
      %781 = vadd.xlane.f32.xlu0 %v780
      %v782 = vpop.xlane.xlu0 %781
      %v783 = vadd.f32 %v776, 1e-08
      %v784 = vadd.f32 %v779, 1e-08
      %v785 = vadd.f32 %v782, 1e-08
      %v786 = vrsqrt.pop %v783
      %v787 = vmul.f32 %v786, %v783
      %v788 = vmul.f32 %v787, %v786
      %v789 = vmul.f32 0.5, %v788
      %v790 = vsub.f32 1.5, %v789
      %v791 = vmul.f32 %v786, %v790
      %vm792 = vweird.f32 %v783
      %vm793 = vweird.f32 %v786
      %vm794 = vmor %vm792, %vm793
      %v795 = vsel %vm794, %v786, %v791
      %v796 = vrsqrt.pop %v784
      %v797 = vmul.f32 %v796, %v784
      %v798 = vmul.f32 %v797, %v796
      %v799 = vmul.f32 0.5, %v798
      %v800 = vsub.f32 1.5, %v799
      %v801 = vmul.f32 %v796, %v800
      %vm802 = vweird.f32 %v784
      %vm803 = vweird.f32 %v796
      %vm804 = vmor %vm802, %vm803
      %v805 = vsel %vm804, %v796, %v801
      %v806 = vrsqrt.pop %v785
      %v807 = vmul.f32 %v806, %v785
      %v808 = vmul.f32 %v807, %v806
      %v809 = vmul.f32 0.5, %v808
      %v810 = vsub.f32 1.5, %v809
      %v811 = vmul.f32 %v806, %v810
      %vm812 = vweird.f32 %v785
      %vm813 = vweird.f32 %v806
      %vm814 = vmor %vm812, %vm813
      %v815 = vsel %vm814, %v806, %v811
      %v816 = vmul.f32 %v716, %v795
      %v817 = vmul.f32 %v719, %v805
      %v818 = vmul.f32 %v721, %v815
      %v820 = vsel %vm464, %v816, 0
      %v823 = vsel %vm464, %v817, 0
      %v826 = vsel %vm464, %v818, 0
      %828 = vmatpush.xpose.msra.mxu0 0.0
      %829 = vmatpush.xpose.msra.mxu0 0.0
      %830 = vmatpush.xpose.msra.mxu0 0.0
      %831 = vmatpush.xpose.msra.mxu0 0.0
      %832 = vmatpush.xpose.msra.mxu0 0.0
      %833 = vmatpush.xpose.msra.mxu0 0.0
      %834 = vmatpush.xpose.msra.mxu0 0.0
      %835 = vmatpush.xpose.msra.mxu0 0.0
      %836 = vmatpush.xpose.msra.mxu0 0.0
      %837 = vmatpush.xpose.msra.mxu0 0.0
      %838 = vmatpush.xpose.msra.mxu0 0.0
      %839 = vmatpush.xpose.msra.mxu0 0.0
      %840 = vmatpush.xpose.msra.mxu0 0.0
      %841 = vmatpush.xpose.msra.mxu0 %v826
      %842 = vmatpush.xpose.msra.mxu0 %v823
      %843 = vmatpush.xpose.msra.mxu0 %v820
      %844 = vmatmul.f32.gmra.mxu0 %v820
      %v845 = vpop.f32.mrf.mxu0
      %v846 = vadd.f32 0.0, %v845
      %847 = vmatmul.f32.gmra.mxu0 %v823
      %v848 = vpop.f32.mrf.mxu0
      %v849 = vadd.f32 0.0, %v848
      %850 = vmatmul.f32.gmra.mxu0 %v826
      %v851 = vpop.f32.mrf.mxu0
      %v852 = vadd.f32 0.0, %v851
      %853 = vdwg.mxu0
      %v854 = vmul.f32 %v731, %v731
      %v855 = vmul.f32 %v734, %v734
      %v856 = vmul.f32 %v736, %v736
      %v857 = vsel %vm464, %v854, 0.0
      %858 = vadd.xlane.f32.xlu0 %v857
      %v859 = vpop.xlane.xlu0 %858
      %v860 = vsel %vm464, %v855, 0.0
      %861 = vadd.xlane.f32.xlu0 %v860
      %v862 = vpop.xlane.xlu0 %861
      %v863 = vsel %vm464, %v856, 0.0
      %864 = vadd.xlane.f32.xlu0 %v863
      %v865 = vpop.xlane.xlu0 %864
      %v866 = vadd.f32 %v859, 1e-08
      %v867 = vadd.f32 %v862, 1e-08
      %v868 = vadd.f32 %v865, 1e-08
      %v869 = vrsqrt.pop %v866
      %v870 = vmul.f32 %v869, %v866
      %v871 = vmul.f32 %v870, %v869
      %v872 = vmul.f32 0.5, %v871
      %v873 = vsub.f32 1.5, %v872
      %v874 = vmul.f32 %v869, %v873
      %vm875 = vweird.f32 %v866
      %vm876 = vweird.f32 %v869
      %vm877 = vmor %vm875, %vm876
      %v878 = vsel %vm877, %v869, %v874
      %v879 = vrsqrt.pop %v867
      %v880 = vmul.f32 %v879, %v867
      %v881 = vmul.f32 %v880, %v879
      %v882 = vmul.f32 0.5, %v881
      %v883 = vsub.f32 1.5, %v882
      %v884 = vmul.f32 %v879, %v883
      %vm885 = vweird.f32 %v867
      %vm886 = vweird.f32 %v879
      %vm887 = vmor %vm885, %vm886
      %v888 = vsel %vm887, %v879, %v884
      %v889 = vrsqrt.pop %v868
      %v890 = vmul.f32 %v889, %v868
      %v891 = vmul.f32 %v890, %v889
      %v892 = vmul.f32 0.5, %v891
      %v893 = vsub.f32 1.5, %v892
      %v894 = vmul.f32 %v889, %v893
      %vm895 = vweird.f32 %v868
      %vm896 = vweird.f32 %v889
      %vm897 = vmor %vm895, %vm896
      %v898 = vsel %vm897, %v889, %v894
      %v899 = vmul.f32 %v731, %v878
      %v900 = vmul.f32 %v734, %v888
      %v901 = vmul.f32 %v736, %v898
      %v903 = vsel %vm464, %v899, 0
      %v906 = vsel %vm464, %v900, 0
      %v909 = vsel %vm464, %v901, 0
      %911 = vmatpush.xpose.msra.mxu0 0.0
      %912 = vmatpush.xpose.msra.mxu0 0.0
      %913 = vmatpush.xpose.msra.mxu0 0.0
      %914 = vmatpush.xpose.msra.mxu0 0.0
      %915 = vmatpush.xpose.msra.mxu0 0.0
      %916 = vmatpush.xpose.msra.mxu0 0.0
      %917 = vmatpush.xpose.msra.mxu0 0.0
      %918 = vmatpush.xpose.msra.mxu0 0.0
      %919 = vmatpush.xpose.msra.mxu0 0.0
      %920 = vmatpush.xpose.msra.mxu0 0.0
      %921 = vmatpush.xpose.msra.mxu0 0.0
      %922 = vmatpush.xpose.msra.mxu0 0.0
      %923 = vmatpush.xpose.msra.mxu0 0.0
      %924 = vmatpush.xpose.msra.mxu0 %v909
      %925 = vmatpush.xpose.msra.mxu0 %v906
      %926 = vmatpush.xpose.msra.mxu0 %v903
      %927 = vmatmul.f32.gmra.mxu0 %v903
      %v928 = vpop.f32.mrf.mxu0
      %v929 = vadd.f32 0.0, %v928
      %930 = vmatmul.f32.gmra.mxu0 %v906
      %v931 = vpop.f32.mrf.mxu0
      %v932 = vadd.f32 0.0, %v931
      %933 = vmatmul.f32.gmra.mxu0 %v909
      %v934 = vpop.f32.mrf.mxu0
      %v935 = vadd.f32 0.0, %v934
      %936 = vdwg.mxu0
      %v937 = vsub.f32 %v846, %v929
      %v938 = vsub.f32 %v849, %v932
      %v939 = vsub.f32 %v852, %v935
      %v940 = vmul.f32 %v937, %v937
      %v941 = vmul.f32 %v938, %v938
      %v942 = vmul.f32 %v939, %v939
      %vm943 = vcmask 195584
      %v944 = vsel %vm943, %v940, 0.0
      %v945 = vsel %vm943, %v941, 0.0
      %v946 = vadd.f32 %v944, %v945
      %v947 = vsel %vm943, %v942, 0.0
      %v948 = vadd.f32 %v946, %v947
      %949 = vadd.xlane.f32.xlu0 %v948
      %v950 = vpop.xlane.xlu0 %949
      %v951 = vrot.slane %v950, 4
      %v952 = vadd.f32 %v950, %v951
      %v953 = vrot.slane %v952, 2
      %v954 = vadd.f32 %v952, %v953
      %v955 = vrot.slane %v954, 1
      %v956 = vadd.f32 %v954, %v955
      %s957 = vtos %v956
      %v958 = vlaneseq
      %v959 = vshrl.u32 %v958, 7
      %vm960 = vcmp.eq.s32.totalorder %v959, 0
      %vm961 = vcmp.eq.s32.totalorder %v959, 1
      %vm962 = vcmp.eq.s32.totalorder %v959, 2
      %v963 = vstv %s770
      %v964 = vsel %vm962, %v963, 0.0
      %v965 = vstv %s957
      %v966 = vsel %vm961, %v965, %v964
      %v967 = vstv %s750
      %v968 = vsel %vm960, %v967, %v966
      %969 = vst [vmem:[%s323] sm:$0xff] %v968
      %p970 = scmp.lt.s32.totalorder %s19, 1
      %s971 = scalar_select %p970, %s19, 1
      %s972 = smul.addr %s971, 8
      %s973 = scalar_lea.vmem %s8, %s972
      // Predicated region
      $region53: #{trainer_forward.1} parent=51 // pred_check
        %p974 = pneg %p215
      $region54: #{trainer_forward.1} parent=51 // pred_check_branch
        %976 = sbr.rel (%p974) target = $region56
      $region55: #{trainer_forward.1} parent=51 // pred_region
        _
      $region56: #{trainer_forward.1} parent=51 // pred_fallthru
        _
    $region52: #{trainer_forward.1} parent=5 // pred_fallthru
      _
    %p977 = scmp.le.s32.totalorder 2, %s14
    // Predicated region
    $region57: #{trainer_forward.1} parent=5 // pred_check
      %p978 = pneg %p977
    $region58: #{trainer_forward.1} parent=5 // pred_check_branch
      %980 = sbr.rel (%p978) target = $region60
    $region59: #{trainer_forward.1} parent=5 // pred_region
      %s981 = ssub.s32 %s14, 2
      // Predicated region
      $region61: #{trainer_forward.1} parent=59 // pred_check
        %p982 = pneg %p221
      $region62: #{trainer_forward.1} parent=59 // pred_check_branch
        %984 = sbr.rel (%p982) target = $region64
      $region63: #{trainer_forward.1} parent=59 // pred_region
        %p985 = scmp.lt.s32.totalorder %s20, 1
        %s986 = scalar_select %p985, %s20, 1
        %s987 = smul.addr %s986, 8
        %s988 = scalar_lea.vmem %s8, %s987
      $region64: #{trainer_forward.1} parent=59 // pred_fallthru
        _
    $region60: #{trainer_forward.1} parent=5 // pred_fallthru
      _
  $region6: #{trainer_forward.1} parent=0 // loop_footer
    %s18 = sadd.s32 1, %s14
  $region7: #{trainer_forward.1} parent=0 // loop_footer_branch
    %13 = sbr.rel target = $region3
  $region8: #{trainer_forward.1} parent=0 // loop_exit
    _

</llo_original>
